<compile_context>
chip_gen: v5e
topology: v5e:2x2
jax: 0.10.0
libtpu: 0.0.40
codegen_flags: <defaults>
</compile_context>

<pallas_src>
import functools

import jax
import jax.numpy as jnp
from jax.experimental import pallas as pl
from jax.experimental.pallas import tpu as pltpu


def _pe_add_kernel(x_ref, pe_ref, o_ref, *, batch):
    # pe tile: (ts, D) -> lane-concat to (ts, B*D) to match the flattened rows.
    pe = pe_ref[...].astype(x_ref.dtype)
    if batch > 1:
        pe = jnp.concatenate([pe] * batch, axis=-1)
    o_ref[...] = x_ref[...] + pe


def _pe_add_dropout_kernel(x_ref, pe_ref, bits_ref, o_ref, *, batch,
                           drop_threshold, scale):
    pe = pe_ref[...].astype(x_ref.dtype)
    if batch > 1:
        pe = jnp.concatenate([pe] * batch, axis=-1)
    y = (x_ref[...] + pe) * jnp.asarray(scale, dtype=x_ref.dtype)
    keep = bits_ref[...] >= jnp.uint32(drop_threshold)   # P(keep) = 1 - p
    o_ref[...] = jnp.where(keep, y, jnp.zeros_like(y))


def _pick_seq_tile(S, B, D, itemsize, with_bits):
    """Sequence-tile size: one buffer set of a few MiB so default double
    buffering fits the scoped-VMEM defaults on v5e/v6e/v7x (no vmem_limit
    override needed)."""
    per_row = B * D * (2 * itemsize + (4 if with_bits else 0))   # x + out (+ bits)
    budget = 6 << 20
    ts = max(1, min(S, budget // max(1, per_row)))
    if S % 8 == 0:
        ts = max(8, (ts // 8) * 8)     # (8,128) sublane rule for the pe block
    else:
        ts = S                         # ragged S: single full-extent block
    return ts


def positional_encoding(x, pos_embed_weight, *, dropout_p=0.1, training=False,
                        rng_key=None):
    """x: (S, B, D); pos_embed_weight: (max_len, D). Returns (S, B, D)."""
    S, B, D = x.shape
    max_len, Dw = pos_embed_weight.shape
    assert Dw == D and S <= max_len

    use_dropout = bool(training) and float(dropout_p) > 0.0
    x2 = x.reshape(S, B * D)                       # free row-major reshape

    ts = _pick_seq_tile(S, B, D, x.dtype.itemsize, use_dropout)
    grid = (pl.cdiv(S, ts),)

    row_spec = pl.BlockSpec((ts, B * D), lambda i: (i, 0))
    if S % 8 == 0:
        pe_in = pos_embed_weight                   # read rows straight off the table
        pe_spec = pl.BlockSpec((ts, D), lambda i: (i, 0))
    else:
        # Ragged seq length: use a full-extent (S, D) block so the sublane rule
        # holds; only in this case is the slice materialized.
        pe_in = pos_embed_weight[:S]
        pe_spec = pl.BlockSpec((S, D), lambda i: (0, 0))

    compiler_params = pltpu.CompilerParams(
        dimension_semantics=("parallel",))         # megacore sharding on v7x

    if not use_dropout:
        kernel = functools.partial(_pe_add_kernel, batch=B)
        out2 = pl.pallas_call(
            kernel,
            out_shape=jax.ShapeDtypeStruct((S, B * D), x.dtype),
            grid=grid,
            in_specs=[row_spec, pe_spec],
            out_specs=row_spec,
            input_output_aliases={0: 0},
            compiler_params=compiler_params,
        )(x2, pe_in)
    else:
        if rng_key is None:
            rng_key = jax.random.PRNGKey(0)
        p = min(max(float(dropout_p), 0.0), 1.0)
        drop_threshold = min(int(round(p * 2.0 ** 32)), 2 ** 32 - 1)
        scale = 1.0 / (1.0 - p) if p < 1.0 else 0.0
        # TODO(synk): on TPU-only deployments, pltpu.prng_random_bits seeded per
        # tile with (seed + pl.program_id(0)) would avoid streaming these bits
        # from HBM; host-generated bits are used so the kernel also runs in
        # interpret mode (no TPU-only PRNG primitives).
        bits = jax.random.bits(rng_key, shape=(S, B * D), dtype=jnp.uint32)
        kernel = functools.partial(_pe_add_dropout_kernel, batch=B,
                                   drop_threshold=drop_threshold, scale=scale)
        out2 = pl.pallas_call(
            kernel,
            out_shape=jax.ShapeDtypeStruct((S, B * D), x.dtype),
            grid=grid,
            in_specs=[row_spec, pe_spec, row_spec],
            out_specs=row_spec,
            input_output_aliases={0: 0},
            compiler_params=compiler_params,
        )(x2, pe_in, bits)

    return out2.reshape(S, B, D)


def init_params(key, d_model, max_len=250):
    # nn.init.kaiming_normal_(weight, mode='fan_in') on a (max_len, d_model)
    # matrix: fan_in = d_model, gain = sqrt(2) -> std = sqrt(2 / d_model).
    std = (2.0 / d_model) ** 0.5
    return jax.random.normal(key, (max_len, d_model), dtype=jnp.float32) * std


if __name__ == "__main__":
    key = jax.random.PRNGKey(0)
    k_w, k_x, k_drop = jax.random.split(key, 3)

    d_model = 128
    max_len = 250
    seq = 8
    batch = 2

    w = init_params(k_w, d_model, max_len)
    x = jax.random.normal(k_x, (seq, batch, d_model), dtype=jnp.float32)

    # Pure-JAX reference (eval mode).
    ref = x + w[:seq][:, None, :]

    # Eval-mode run (dropout is identity, matching module.eval()).
    out = jax.block_until_ready(
        positional_encoding(x, w, dropout_p=0.1, training=False))
    assert out.shape == (seq, batch, d_model)
    assert jnp.allclose(out, ref, atol=1e-5, rtol=1e-5), "eval mismatch vs reference"

    # Training-mode run (inverted dropout): dropped entries are exactly zero,
    # kept entries equal ref / (1 - p).
    p = 0.1
    out_train = jax.block_until_ready(
        positional_encoding(x, w, dropout_p=p, training=True, rng_key=k_drop))
    assert out_train.shape == (seq, batch, d_model)
    keep = out_train != 0
    assert jnp.allclose(jnp.where(keep, out_train, 0.0),
                        jnp.where(keep, ref * (1.0 / (1.0 - p)), 0.0),
                        atol=1e-5, rtol=1e-5), "train mismatch vs reference"

    print("KERNEL_OK")
</pallas_src>

<mosaic_0001>
module attributes {stable_mosaic.version = 11 : i64} {
  func.func @_pe_add_kernel(%arg0: i32, %arg1: memref<8x256xf32, #tpu.memory_space<vmem>>, %arg2: memref<8x128xf32, #tpu.memory_space<vmem>>, %arg3: memref<8x256xf32, #tpu.memory_space<vmem>>) attributes {dimension_semantics = [#tpu.dimension_semantics<parallel>], iteration_bounds = array<i64: 1>, scalar_prefetch = 0 : i64, scratch_operands = 0 : i64, tpu.core_type = #tpu.core_type<tc>, window_params = [{transform_indices = @transform_0, window_bounds = array<i64: 8, 256>}, {transform_indices = @transform_1, window_bounds = array<i64: 8, 128>}, {transform_indices = @transform_2, window_bounds = array<i64: 8, 256>}]} {
    %c0 = arith.constant 0 : index
    %c0_0 = arith.constant 0 : index
    %0 = vector.load %arg2[%c0, %c0_0] : memref<8x128xf32, #tpu.memory_space<vmem>>, vector<8x128xf32>
    %1 = tpu.concatenate %0, %0 in 1 : vector<8x128xf32>, vector<8x128xf32> -> vector<8x256xf32>
    %c0_1 = arith.constant 0 : index
    %c0_2 = arith.constant 0 : index
    %2 = vector.load %arg1[%c0_1, %c0_2] : memref<8x256xf32, #tpu.memory_space<vmem>>, vector<8x256xf32>
    %3 = arith.addf %2, %1 : vector<8x256xf32>
    %c0_3 = arith.constant 0 : index
    %c0_4 = arith.constant 0 : index
    %4 = vector.load %arg3[%c0_3, %c0_4] : memref<8x256xf32, #tpu.memory_space<vmem>>, vector<8x256xf32>
    tpu.vector_store %arg3[%c0_3, %c0_4], %3 {strides = array<i32>} : memref<8x256xf32, #tpu.memory_space<vmem>>, vector<8x256xf32>,
    return
  }
  func.func @transform_0(%arg0: i32) -> (i32, i32) {
    %c0_i32 = arith.constant 0 : i32
    %c0_i32_0 = arith.constant 0 : i32
    return %arg0, %c0_i32 : i32, i32
  }
  func.func @transform_1(%arg0: i32) -> (i32, i32) {
    %c0_i32 = arith.constant 0 : i32
    %c0_i32_0 = arith.constant 0 : i32
    return %arg0, %c0_i32 : i32, i32
  }
  func.func @transform_2(%arg0: i32) -> (i32, i32) {
    %c0_i32 = arith.constant 0 : i32
    %c0_i32_0 = arith.constant 0 : i32
    return %arg0, %c0_i32 : i32, i32
  }
}

</mosaic_0001>

<llo_original>
// kernel: tpu_custom_call.1
$region0: #{tpu_custom_call.1}
  #allocation0 [shape = 'u32[]', space=smem, size = 0x4, offset = 0x4, fixed_abs, tag = 'smem constant byte address 0x4 - core index']
  #allocation1 [shape = 'u32[72,128]{1,0:T(1,128)}', space=vmem, size = 0x9000, scoped, tag = 'internal scratch']
  %s0 = inlined_call_operand.hbm [shape: f32[8,256], index: 0, kind: input, shape index: {}, may-alias: {0,2}]
  %s1 = inlined_call_operand.hbm [shape: f32[250,128], index: 1, kind: input, shape index: {}]
  %s2 = inlined_call_operand.hbm [shape: f32[8,256], index: 2, kind: output, shape index: {}, may-alias: {0,2}]
  %s3 = sld [smem:[#allocation0]]
  $region26: #{tpu_custom_call.1} parent=0
    _
  %s5 = ssub.s32 1, %s3
  %s6 = scalar_select 0, %s5, %s3
  $region1: #{tpu_custom_call.1} parent=0
    #allocation2 [shape = 'u8[8192]{0}', space=vmem, size = 0x2000, scoped, tag = 'input window, operand 0, single buffered']
    #allocation3 [shape = 's32[1]{0}', space=sflag, size = 0x4, scoped, tag = 'scoped memory for tpu_custom_call.1']
    #allocation4 [shape = 's32[1]{0}', space=sflag, size = 0x4, scoped, tag = 'scoped memory for tpu_custom_call.1']
    #allocation5 [shape = 'u8[4096]{0}', space=vmem, size = 0x1000, scoped, tag = 'input window, operand 1, single buffered']
    #allocation6 [shape = 's32[1]{0}', space=sflag, size = 0x4, scoped, tag = 'scoped memory for tpu_custom_call.1']
    #allocation7 [shape = 'u8[8192]{0}', space=vmem, size = 0x2000, scoped, tag = 'output window, operand 0, single buffered']
    %7 = vsyncpa [#allocation3], 0
    %8 = vsyncpa [#allocation6], 0
    %9 = vsyncpa [#allocation4], 0
    // Predicated region
    $region2: #{tpu_custom_call.1} parent=1 // pred_check
      _
    $region3: #{tpu_custom_call.1} parent=1 // pred_check_branch
      %11 = sbr.rel (0) target = $region5
    $region4: #{tpu_custom_call.1} parent=1 // pred_region
      %13 = vsyncadd [#allocation3], 0
      %s15 = sshll.u32 %s0, 4
      %s16 = int_to_ptr.hbm [resolvable:$true] %s15
      %s17 = sshll.u32 [#allocation2], 4
      %s18 = int_to_ptr.vmem [resolvable:$true] %s17
      %20 = dma.hbm_to_vmem [thread:$0]  %s16, 256, %s18, [#allocation3]
    $region5: #{tpu_custom_call.1} parent=1 // pred_fallthru
      _
    // Predicated region
    $region6: #{tpu_custom_call.1} parent=1 // pred_check
      _
    $region7: #{tpu_custom_call.1} parent=1 // pred_check_branch
      %22 = sbr.rel (0) target = $region9
    $region8: #{tpu_custom_call.1} parent=1 // pred_region
      %24 = vsyncadd [#allocation6], 0
      %s26 = sshll.u32 %s1, 4
      %s27 = int_to_ptr.hbm [resolvable:$true] %s26
      %s28 = sshll.u32 [#allocation5], 4
      %s29 = int_to_ptr.vmem [resolvable:$true] %s28
      %31 = dma.hbm_to_vmem [thread:$0]  %s27, 128, %s29, [#allocation6]
    $region9: #{tpu_custom_call.1} parent=1 // pred_fallthru
      _
    // Predicated region
    $region10: #{tpu_custom_call.1} parent=1 // pred_check
      _
    $region11: #{tpu_custom_call.1} parent=1 // pred_check_branch
      %33 = sbr.rel (0) target = $region13
    $region12: #{tpu_custom_call.1} parent=1 // pred_region
      %35 = dma.done [#allocation3], 256
    $region13: #{tpu_custom_call.1} parent=1 // pred_fallthru
      _
    // Predicated region
    $region14: #{tpu_custom_call.1} parent=1 // pred_check
      _
    $region15: #{tpu_custom_call.1} parent=1 // pred_check_branch
      %37 = sbr.rel (0) target = $region17
    $region16: #{tpu_custom_call.1} parent=1 // pred_region
      %39 = dma.done [#allocation6], 128
    $region17: #{tpu_custom_call.1} parent=1 // pred_fallthru
      _
    %v40 = vld [vmem:[#allocation5] sm:$0xff]
    %v41 = vld [vmem:[#allocation2] sm:$0xff]
    %v42 = vld [vmem:[#allocation2 + $0x8] sm:$0xff]
    %v43 = vadd.f32 %v41, %v40
    %v44 = vadd.f32 %v42, %v40
    %45 = vst [vmem:[#allocation7] sm:$0xff] %v43
    %46 = vst [vmem:[#allocation7 + $0x8] sm:$0xff] %v44
    // Predicated region
    $region18: #{tpu_custom_call.1} parent=1 // pred_check
      _
    $region19: #{tpu_custom_call.1} parent=1 // pred_check_branch
      %48 = sbr.rel (0) target = $region21
    $region20: #{tpu_custom_call.1} parent=1 // pred_region
      %50 = vsyncadd [#allocation4], 0
      %s52 = sshll.u32 [#allocation7], 4
      %s53 = int_to_ptr.vmem [resolvable:$true] %s52
      %s54 = sshll.u32 %s2, 4
      %s55 = int_to_ptr.hbm [resolvable:$true] %s54
      %57 = dma.vmem_to_hbm [thread:$0]  %s53, 256, %s55, [#allocation4]
    $region21: #{tpu_custom_call.1} parent=1 // pred_fallthru
      _
    // Predicated region
    $region22: #{tpu_custom_call.1} parent=1 // pred_check
      _
    $region23: #{tpu_custom_call.1} parent=1 // pred_check_branch
      %59 = sbr.rel (0) target = $region25
    $region24: #{tpu_custom_call.1} parent=1 // pred_region
      %61 = dma.done [#allocation4], 256
    $region25: #{tpu_custom_call.1} parent=1 // pred_fallthru
      _
    %62 = vsyncpa [#allocation3], 1
    %63 = vsyncpa [#allocation6], 1
    %64 = vsyncpa [#allocation4], 1

</llo_original>
